<compile_context>
chip_gen: v5e
topology: v5e:2x2
jax: 0.10.0
libtpu: 0.0.40
codegen_flags: <defaults>
</compile_context>

<pallas_src>
import functools

import jax
import jax.numpy as jnp
from jax import lax
from jax.experimental import pallas as pl
from jax.experimental.pallas import tpu as pltpu

_CDIMS_NT = (((1,), (1,)), ((), ()))   # contract last dims of both (x @ Y.T)
_CDIMS_NN = (((1,), (0,)), ((), ()))   # standard matmul (x @ Y)


def _act(x):
    # ACTIVATIONS[act] -> ReLU (chosen deterministically for this synthetic kernel).
    return jnp.maximum(x, 0.0)


def _recip(x):
    # EUP approximate reciprocal + one Newton step: ~f32 accurate, frees the VALU.
    r = pl.reciprocal(x, approx=True)
    return r * (2.0 - x * r)


def _split_f32(x):
    """Split f32 into bf16 hi/lo parts (x ~= hi + lo)."""
    hi = x.astype(jnp.bfloat16)
    lo = (x - hi.astype(jnp.float32)).astype(jnp.bfloat16)
    return hi, lo


def _dot3(a, b, dims):
    """bf16x3 emulation of an f32 matmul: 3 native bf16 MXU passes, f32 accumulate."""
    a_hi, a_lo = _split_f32(a)
    b_hi, b_lo = _split_f32(b)
    d = functools.partial(lax.dot_general, dimension_numbers=dims,
                          preferred_element_type=jnp.float32)
    return d(a_hi, b_hi) + d(a_hi, b_lo) + d(a_lo, b_hi)


def _dot3_rhs_split(a, b_hi, b_lo, dims):
    """bf16x3 matmul where the rhs is already split (kept split in VMEM scratch)."""
    a_hi, a_lo = _split_f32(a)
    d = functools.partial(lax.dot_general, dimension_numbers=dims,
                          preferred_element_type=jnp.float32)
    return d(a_hi, b_hi) + d(a_hi, b_lo) + d(a_lo, b_hi)


# ----------------------------------------------------------------------------- small
def _gat_small_kernel(h_ref, w_ref, a_ref, o_ref, *, num_graphs, num_nodes):
    # h_ref / o_ref: (B*N, H) -- batch folded into the matmul M dimension. Pure f32.
    f32 = jnp.float32
    wh = lax.dot_general(h_ref[...], w_ref[...], _CDIMS_NT,
                         preferred_element_type=f32)                  # (B*N, H) = h @ W.T
    s_i = lax.dot_general(wh, a_ref[0:1, :], _CDIMS_NT,
                          preferred_element_type=f32)                 # (B*N, 1)
    for b in range(num_graphs):                                       # tiny static unroll
        lo = b * num_nodes
        whb = wh[lo:lo + num_nodes, :]                                # (N, H)
        sib = s_i[lo:lo + num_nodes, :]                               # (N, 1)
        s_j = lax.dot_general(a_ref[1:2, :], whb, _CDIMS_NT,
                              preferred_element_type=f32)             # (1, N)
        e = _act(sib + s_j)                                           # (N, N)
        # relu is monotone => relu(s_i + max_j s_j) == max_j relu(s_i + s_j) (exact).
        m = _act(sib + jnp.max(s_j, axis=1, keepdims=True))           # (N, 1)
        p = jnp.exp(e - m)
        denom = jnp.sum(p, axis=1, keepdims=True)                     # (N, 1)
        out = lax.dot_general(p, whb, _CDIMS_NN, preferred_element_type=f32)
        # Deferred normalization: scale the (N, H) result, not the (N, N) scores.
        o_ref[lo:lo + num_nodes, :] = _act(out * _recip(denom)).astype(o_ref.dtype)


# ----------------------------------------------------------------------------- tiled
def _gat_tiled_kernel(h_ref, w_ref, a_ref, o_ref,
                      whh_ref, whl_ref, si_ref, sj_ref, smax_ref):
    # h_ref: (N, H) whole graph, resident across query tiles; o_ref: (TQ, H) tile.
    f32 = jnp.float32
    t = pl.program_id(1)
    n = h_ref.shape[0]

    @pl.when(t == 0)          # hoist per-batch work (Wh, score vectors, key max)
    def _():
        wh = _dot3(h_ref[...], w_ref[...], _CDIMS_NT)                 # (N, H) f32 (bf16x3)
        wh_hi, wh_lo = _split_f32(wh)                                 # keep split for attn@Wh
        whh_ref[...] = wh_hi
        whl_ref[...] = wh_lo
        si = lax.dot_general(wh, a_ref[0:1, :], _CDIMS_NT,
                             preferred_element_type=f32)              # (N, 1) query scores
        if si_ref.shape[0] == n:
            si_ref[...] = si
        else:                                                         # ragged tiling pad
            si_ref[0:n, :] = si
        sj = lax.dot_general(a_ref[1:2, :], wh, _CDIMS_NT,
                             preferred_element_type=f32)              # (1, N) key scores
        sj_ref[...] = sj
        smax_ref[...] = jnp.max(sj, axis=1, keepdims=True)            # (1, 1) max_j s_j

    tq = o_ref.shape[0]
    q0 = pl.multiple_of(t * tq, tq)
    s_i = si_ref[pl.ds(q0, tq), :]                                    # (TQ, 1)
    e = _act(s_i + sj_ref[...])                                       # (TQ, N)
    # Exact row max of e via the relu/max identity -> no (TQ, N) XLU reduce per tile.
    m = _act(s_i + smax_ref[...])                                     # (TQ, 1)
    p = jnp.exp(e - m)                                                # (TQ, N)
    denom = jnp.sum(p, axis=1, keepdims=True)                         # (TQ, 1)
    out = _dot3_rhs_split(p, whh_ref[...], whl_ref[...], _CDIMS_NN)   # (TQ, H) bf16x3 MXU
    # Deferred normalization: scale the (TQ, H) output tile instead of (TQ, N) scores.
    o_ref[...] = _act(out * _recip(denom)).astype(o_ref.dtype)


# --------------------------------------------------------------------------- sizing
def _pad_to(x, m):
    return ((x + m - 1) // m) * m


def _physical_vmem_bytes():
    try:
        v = getattr(pltpu.get_tpu_info(), "vmem_capacity_bytes", None)
        if v:
            return int(v)
    except Exception:
        pass
    return 64 * 1024 * 1024        # conservative default (== v7x per-TC VMEM)


def _tiled_vmem_bytes(N, H, TQ, n_tiles):
    """Upper-bound VMEM estimate for the tiled kernel (accounts for (8,128) padding)."""
    f32, bf16 = 4, 2
    Hp = _pad_to(H, 128)
    Np = _pad_to(N, 128)
    blocks = 2 * f32 * (_pad_to(N, 8) * Hp       # h block (double-buffered)
                        + _pad_to(H, 8) * Hp     # W
                        + 8 * Hp                 # a (2, H)
                        + _pad_to(TQ, 8) * Hp)   # out block
    scratch = (2 * bf16 * _pad_to(N, 16) * Hp            # Wh hi/lo (bf16)
               + f32 * _pad_to(n_tiles * TQ, 8) * 128    # s_i (·,1) lane-padded
               + f32 * 8 * Np                            # s_j (1,N) sublane-padded
               + f32 * 8 * 128)                          # max_j s_j
    temps = f32 * _pad_to(TQ, 8) * Np * 6 + 2 * bf16 * _pad_to(TQ, 8) * Np
    return blocks + scratch + temps


def _pick_tiling(N, H):
    """Choose (TQ, n_tiles, vmem_cap): prefer TQ == N (grid (B, 1)) when it fits."""
    cap = int(_physical_vmem_bytes() * 0.8)      # headroom for Mosaic's own scratch
    budget = int(cap / 1.3)
    if _tiled_vmem_bytes(N, H, N, 1) <= budget:
        return N, 1, cap
    best_div, best_any = None, 8
    for tq in range(8, N, 8):
        if _tiled_vmem_bytes(N, H, tq, -(-N // tq)) <= budget:
            best_any = tq
            if N % tq == 0:
                best_div = tq
    tq = best_div if best_div is not None else best_any  # ragged last tile is masked
    return tq, -(-N // tq), cap


def _use_small_path(B, N, H):
    if B > 8 or N > 128:
        return False
    est = 4 * (3 * B * N * _pad_to(H, 128) + 6 * _pad_to(N, 8) * _pad_to(N, 128))
    return est <= 8 * 1024 * 1024


# --------------------------------------------------------------------------- wrapper
def graph_attentional_layer(h, W, a2):
    """h: (B, N, H); W: (H, H) = nn.Linear(H, H, bias=False).weight; a2: (2, H)."""
    B, N, H = h.shape

    # Small-problem fast path: single grid step, batch folded into the matmul M dim.
    if _use_small_path(B, N, H):
        kernel = functools.partial(_gat_small_kernel, num_graphs=B, num_nodes=N)
        out = pl.pallas_call(
            kernel,
            out_shape=jax.ShapeDtypeStruct((B * N, H), h.dtype),
            grid_spec=pltpu.PrefetchScalarGridSpec(
                num_scalar_prefetch=0,
                grid=(1,),
                in_specs=[
                    pl.BlockSpec((B * N, H), lambda i: (0, 0)),
                    pl.BlockSpec((H, H), lambda i: (0, 0)),
                    pl.BlockSpec((2, H), lambda i: (0, 0)),
                ],
                out_specs=pl.BlockSpec((B * N, H), lambda i: (0, 0)),
            ),
            compiler_params=pltpu.CompilerParams(
                dimension_semantics=("arbitrary",)),
        )(h.reshape(B * N, H), W, a2)
        return out.reshape(B, N, H)

    # General path: per-batch Wh / scores hoisted into VMEM scratch; TQ == N whenever
    # the working set fits the generation-aware VMEM budget (grid collapses to (B, 1)).
    TQ, n_tiles, cap = _pick_tiling(N, H)
    est = _tiled_vmem_bytes(N, H, TQ, n_tiles)
    vmem_limit = int(min(max(32 * 1024 * 1024, 2 * est), cap))
    return pl.pallas_call(
        _gat_tiled_kernel,
        out_shape=jax.ShapeDtypeStruct((B, N, H), h.dtype),
        grid_spec=pltpu.PrefetchScalarGridSpec(
            num_scalar_prefetch=0,
            grid=(B, n_tiles),
            in_specs=[
                pl.BlockSpec((None, N, H), lambda b, t: (b, 0, 0)),  # whole graph per batch
                pl.BlockSpec((H, H), lambda b, t: (0, 0)),
                pl.BlockSpec((2, H), lambda b, t: (0, 0)),
            ],
            out_specs=pl.BlockSpec((None, TQ, H), lambda b, t: (b, t, 0)),
            scratch_shapes=[
                pltpu.VMEM((N, H), jnp.bfloat16),            # Wh hi
                pltpu.VMEM((N, H), jnp.bfloat16),            # Wh lo
                pltpu.VMEM((n_tiles * TQ, 1), jnp.float32),  # s_i (query-side scores)
                pltpu.VMEM((1, N), jnp.float32),             # s_j (key-side scores, row)
                pltpu.VMEM((1, 1), jnp.float32),             # max_j s_j
            ],
        ),
        compiler_params=pltpu.CompilerParams(
            dimension_semantics=("parallel", "arbitrary"),
            vmem_limit_bytes=vmem_limit),
    )(h, W, a2)


# -------------------------------------------------------------------------- reference
def _reference(h, W, a2):
    # Mirrors the PyTorch forward: sum(h_cat * a, 3) == <Wh_i, a_i> + <Wh_j, a_j>,
    # so the (B, N, N, 2H) concatenation is never materialized.
    hp = lax.Precision.HIGHEST
    wh = jnp.einsum("bnh,oh->bno", h, W, precision=hp)        # Linear, no bias
    s_i = jnp.einsum("bnh,h->bn", wh, a2[0], precision=hp)
    s_j = jnp.einsum("bnh,h->bn", wh, a2[1], precision=hp)
    e = _act(s_i[:, :, None] + s_j[:, None, :])               # (B, N, N)
    attn = jax.nn.softmax(e, axis=2)
    return _act(jnp.einsum("bij,bjh->bih", attn, wh, precision=hp))


if __name__ == "__main__":
    key = jax.random.PRNGKey(0)

    def make_inputs(k, B, N, H):
        k_h, k_w, k_a = jax.random.split(k, 3)
        h = jax.random.normal(k_h, (B, N, H), dtype=jnp.float32)
        # Deterministic synthetic params (shapes per __init__):
        #  W: Linear(H,H,bias=False).weight; a: xavier_normal on (1,1,1,2H) -> (2,H).
        w_bound = 1.0 / jnp.sqrt(jnp.float32(H))
        W = jax.random.uniform(k_w, (H, H), dtype=jnp.float32,
                               minval=-w_bound, maxval=w_bound)
        xav_std = jnp.sqrt(2.0 / (1.0 + 2.0 * H))
        a2 = xav_std * jax.random.normal(k_a, (2, H), dtype=jnp.float32)
        return h, W, a2

    k1, k2 = jax.random.split(key)

    # 1) Module-sized problem (batch=2, nodes=8, hidden=32): small fast path (f32).
    h, W, a2 = make_inputs(k1, 2, 8, 32)
    out = jax.block_until_ready(graph_attentional_layer(h, W, a2))
    ref = _reference(h, W, a2)
    assert jnp.allclose(out, ref, atol=1e-5, rtol=1e-5), (
        f"small path max abs err {jnp.max(jnp.abs(out - ref))}")

    # 2) Larger graph exercising the tiled path (TQ==N collapse, bf16x3 MXU,
    #    deferred normalization, relu/max identity).
    h, W, a2 = make_inputs(k2, 2, 512, 128)
    out = jax.block_until_ready(graph_attentional_layer(h, W, a2))
    ref = _reference(h, W, a2)
    assert jnp.allclose(out, ref, atol=1e-4, rtol=1e-4), (
        f"tiled path max abs err {jnp.max(jnp.abs(out - ref))}")

    print("KERNEL_OK")
</pallas_src>

<mosaic_0001>
module attributes {stable_mosaic.version = 11 : i64} {
  func.func @_gat_small_kernel(%arg0: i32, %arg1: memref<16x32xf32, #tpu.memory_space<vmem>>, %arg2: memref<32x32xf32, #tpu.memory_space<vmem>>, %arg3: memref<2x32xf32, #tpu.memory_space<vmem>>, %arg4: memref<16x32xf32, #tpu.memory_space<vmem>>) attributes {dimension_semantics = [#tpu.dimension_semantics<arbitrary>], iteration_bounds = array<i64: 1>, scalar_prefetch = 0 : i64, scratch_operands = 0 : i64, tpu.core_type = #tpu.core_type<tc>, window_params = [{pipeline_mode = #tpu.pipeline_mode<synchronous>, transform_indices = @transform_0, window_bounds = array<i64: 16, 32>}, {pipeline_mode = #tpu.pipeline_mode<synchronous>, transform_indices = @transform_1, window_bounds = array<i64: 32, 32>}, {pipeline_mode = #tpu.pipeline_mode<synchronous>, transform_indices = @transform_2, window_bounds = array<i64: 2, 32>}, {pipeline_mode = #tpu.pipeline_mode<synchronous>, transform_indices = @transform_3, window_bounds = array<i64: 16, 32>}]} {
    %c0 = arith.constant 0 : index
    %c0_0 = arith.constant 0 : index
    %0 = vector.load %arg1[%c0, %c0_0] : memref<16x32xf32, #tpu.memory_space<vmem>>, vector<16x32xf32>
    %c0_1 = arith.constant 0 : index
    %c0_2 = arith.constant 0 : index
    %1 = vector.load %arg2[%c0_1, %c0_2] : memref<32x32xf32, #tpu.memory_space<vmem>>, vector<32x32xf32>
    %cst = arith.constant dense<0.000000e+00> : vector<16x32xf32>
    %2 = tpu.matmul %0, %1, %cst {dimension_numbers = #tpu.dot_dimension_numbers<[1], [1], [0], [0], [0, 0, 1, 0], [], []>} : vector<16x32xf32>, vector<32x32xf32>, vector<16x32xf32> -> vector<16x32xf32>
    %c0_3 = arith.constant 0 : index
    %c0_4 = arith.constant 0 : index
    %3 = vector.load %arg3[%c0_3, %c0_4] : memref<2x32xf32, #tpu.memory_space<vmem>>, vector<1x32xf32>
    %cst_5 = arith.constant dense<0.000000e+00> : vector<16x1xf32>
    %4 = tpu.matmul %2, %3, %cst_5 {dimension_numbers = #tpu.dot_dimension_numbers<[1], [1], [0], [0], [0, 0, 1, 0], [], []>} : vector<16x32xf32>, vector<1x32xf32>, vector<16x1xf32> -> vector<16x1xf32>
    %5 = vector.extract_strided_slice %2 {offsets = [0, 0], sizes = [8, 32], strides = [1, 1]} : vector<16x32xf32> to vector<8x32xf32>
    %6 = vector.extract_strided_slice %4 {offsets = [0, 0], sizes = [8, 1], strides = [1, 1]} : vector<16x1xf32> to vector<8x1xf32>
    %c1 = arith.constant 1 : index
    %c0_6 = arith.constant 0 : index
    %7 = vector.load %arg3[%c1, %c0_6] : memref<2x32xf32, #tpu.memory_space<vmem>>, vector<1x32xf32>
    %cst_7 = arith.constant dense<0.000000e+00> : vector<1x8xf32>
    %8 = tpu.matmul %7, %5, %cst_7 {dimension_numbers = #tpu.dot_dimension_numbers<[1], [1], [0], [0], [0, 0, 1, 0], [], []>} : vector<1x32xf32>, vector<8x32xf32>, vector<1x8xf32> -> vector<1x8xf32>
    %9 = vector.broadcast %6 : vector<8x1xf32> to vector<8x8xf32>
    %10 = vector.broadcast %8 : vector<1x8xf32> to vector<8x8xf32>
    %11 = arith.addf %9, %10 : vector<8x8xf32>
    %cst_8 = arith.constant 0.000000e+00 : f32
    %12 = vector.broadcast %cst_8 : f32 to vector<8x8xf32>
    %13 = arith.maximumf %11, %12 : vector<8x8xf32>
    %cst_9 = arith.constant dense<0xFF800000> : vector<1xf32>
    %14 = vector.multi_reduction <maximumf>, %8, %cst_9 [1] : vector<1x8xf32> to vector<1xf32>
    %15 = vector.shape_cast %14 : vector<1xf32> to vector<1x1xf32>
    %16 = vector.broadcast %15 : vector<1x1xf32> to vector<8x1xf32>
    %17 = arith.addf %6, %16 : vector<8x1xf32>
    %cst_10 = arith.constant 0.000000e+00 : f32
    %18 = vector.broadcast %cst_10 : f32 to vector<8x1xf32>
    %19 = arith.maximumf %17, %18 : vector<8x1xf32>
    %20 = vector.broadcast %19 : vector<8x1xf32> to vector<8x8xf32>
    %21 = arith.subf %13, %20 : vector<8x8xf32>
    %22 = math.exp %21 : vector<8x8xf32>
    %cst_11 = arith.constant dense<0.000000e+00> : vector<8xf32>
    %23 = vector.multi_reduction <add>, %22, %cst_11 [1] : vector<8x8xf32> to vector<8xf32>
    %24 = vector.shape_cast %23 : vector<8xf32> to vector<8x1xf32>
    %cst_12 = arith.constant dense<0.000000e+00> : vector<8x32xf32>
    %25 = tpu.matmul %22, %5, %cst_12 {dimension_numbers = #tpu.dot_dimension_numbers<[1], [0], [0], [1], [0, 0, 1, 1], [], []>} : vector<8x8xf32>, vector<8x32xf32>, vector<8x32xf32> -> vector<8x32xf32>
    %26 = tpu.reciprocal %24 {approx = true} : vector<8x1xf32> -> vector<8x1xf32>
    %27 = arith.mulf %24, %26 : vector<8x1xf32>
    %cst_13 = arith.constant 2.000000e+00 : f32
    %28 = vector.broadcast %cst_13 : f32 to vector<8x1xf32>
    %29 = arith.subf %28, %27 : vector<8x1xf32>
    %30 = arith.mulf %26, %29 : vector<8x1xf32>
    %31 = vector.broadcast %30 : vector<8x1xf32> to vector<8x32xf32>
    %32 = arith.mulf %25, %31 : vector<8x32xf32>
    %cst_14 = arith.constant 0.000000e+00 : f32
    %33 = vector.broadcast %cst_14 : f32 to vector<8x32xf32>
    %34 = arith.maximumf %32, %33 : vector<8x32xf32>
    %c0_15 = arith.constant 0 : index
    %c0_16 = arith.constant 0 : index
    %35 = vector.load %arg4[%c0_15, %c0_16] : memref<16x32xf32, #tpu.memory_space<vmem>>, vector<8x32xf32>
    tpu.vector_store %arg4[%c0_15, %c0_16], %34 {strides = array<i32>} : memref<16x32xf32, #tpu.memory_space<vmem>>, vector<8x32xf32>,
    %36 = vector.extract_strided_slice %2 {offsets = [8, 0], sizes = [8, 32], strides = [1, 1]} : vector<16x32xf32> to vector<8x32xf32>
    %37 = vector.extract_strided_slice %4 {offsets = [8, 0], sizes = [8, 1], strides = [1, 1]} : vector<16x1xf32> to vector<8x1xf32>
    %c1_17 = arith.constant 1 : index
    %c0_18 = arith.constant 0 : index
    %38 = vector.load %arg3[%c1_17, %c0_18] : memref<2x32xf32, #tpu.memory_space<vmem>>, vector<1x32xf32>
    %cst_19 = arith.constant dense<0.000000e+00> : vector<1x8xf32>
    %39 = tpu.matmul %38, %36, %cst_19 {dimension_numbers = #tpu.dot_dimension_numbers<[1], [1], [0], [0], [0, 0, 1, 0], [], []>} : vector<1x32xf32>, vector<8x32xf32>, vector<1x8xf32> -> vector<1x8xf32>
    %40 = vector.broadcast %37 : vector<8x1xf32> to vector<8x8xf32>
    %41 = vector.broadcast %39 : vector<1x8xf32> to vector<8x8xf32>
    %42 = arith.addf %40, %41 : vector<8x8xf32>
    %cst_20 = arith.constant 0.000000e+00 : f32
    %43 = vector.broadcast %cst_20 : f32 to vector<8x8xf32>
    %44 = arith.maximumf %42, %43 : vector<8x8xf32>
    %cst_21 = arith.constant dense<0xFF800000> : vector<1xf32>
    %45 = vector.multi_reduction <maximumf>, %39, %cst_21 [1] : vector<1x8xf32> to vector<1xf32>
    %46 = vector.shape_cast %45 : vector<1xf32> to vector<1x1xf32>
    %47 = vector.broadcast %46 : vector<1x1xf32> to vector<8x1xf32>
    %48 = arith.addf %37, %47 : vector<8x1xf32>
    %cst_22 = arith.constant 0.000000e+00 : f32
    %49 = vector.broadcast %cst_22 : f32 to vector<8x1xf32>
    %50 = arith.maximumf %48, %49 : vector<8x1xf32>
    %51 = vector.broadcast %50 : vector<8x1xf32> to vector<8x8xf32>
    %52 = arith.subf %44, %51 : vector<8x8xf32>
    %53 = math.exp %52 : vector<8x8xf32>
    %cst_23 = arith.constant dense<0.000000e+00> : vector<8xf32>
    %54 = vector.multi_reduction <add>, %53, %cst_23 [1] : vector<8x8xf32> to vector<8xf32>
    %55 = vector.shape_cast %54 : vector<8xf32> to vector<8x1xf32>
    %cst_24 = arith.constant dense<0.000000e+00> : vector<8x32xf32>
    %56 = tpu.matmul %53, %36, %cst_24 {dimension_numbers = #tpu.dot_dimension_numbers<[1], [0], [0], [1], [0, 0, 1, 1], [], []>} : vector<8x8xf32>, vector<8x32xf32>, vector<8x32xf32> -> vector<8x32xf32>
    %57 = tpu.reciprocal %55 {approx = true} : vector<8x1xf32> -> vector<8x1xf32>
    %58 = arith.mulf %55, %57 : vector<8x1xf32>
    %cst_25 = arith.constant 2.000000e+00 : f32
    %59 = vector.broadcast %cst_25 : f32 to vector<8x1xf32>
    %60 = arith.subf %59, %58 : vector<8x1xf32>
    %61 = arith.mulf %57, %60 : vector<8x1xf32>
    %62 = vector.broadcast %61 : vector<8x1xf32> to vector<8x32xf32>
    %63 = arith.mulf %56, %62 : vector<8x32xf32>
    %cst_26 = arith.constant 0.000000e+00 : f32
    %64 = vector.broadcast %cst_26 : f32 to vector<8x32xf32>
    %65 = arith.maximumf %63, %64 : vector<8x32xf32>
    %c8 = arith.constant 8 : index
    %c0_27 = arith.constant 0 : index
    %66 = vector.load %arg4[%c8, %c0_27] : memref<16x32xf32, #tpu.memory_space<vmem>>, vector<8x32xf32>
    tpu.vector_store %arg4[%c8, %c0_27], %65 {strides = array<i32>} : memref<16x32xf32, #tpu.memory_space<vmem>>, vector<8x32xf32>,
    return
  }
  func.func @transform_0(%arg0: i32) -> (i32, i32) {
    %c0_i32 = arith.constant 0 : i32
    %c0_i32_0 = arith.constant 0 : i32
    %c0_i32_1 = arith.constant 0 : i32
    return %c0_i32, %c0_i32_0 : i32, i32
  }
  func.func @transform_1(%arg0: i32) -> (i32, i32) {
    %c0_i32 = arith.constant 0 : i32
    %c0_i32_0 = arith.constant 0 : i32
    %c0_i32_1 = arith.constant 0 : i32
    return %c0_i32, %c0_i32_0 : i32, i32
  }
  func.func @transform_2(%arg0: i32) -> (i32, i32) {
    %c0_i32 = arith.constant 0 : i32
    %c0_i32_0 = arith.constant 0 : i32
    %c0_i32_1 = arith.constant 0 : i32
    return %c0_i32, %c0_i32_0 : i32, i32
  }
  func.func @transform_3(%arg0: i32) -> (i32, i32) {
    %c0_i32 = arith.constant 0 : i32
    %c0_i32_0 = arith.constant 0 : i32
    %c0_i32_1 = arith.constant 0 : i32
    return %c0_i32, %c0_i32_0 : i32, i32
  }
}

</mosaic_0001>

<llo_original>
// kernel: tpu_custom_call.1
$region0: #{tpu_custom_call.1}
  #allocation0 [shape = 'u32[]', space=smem, size = 0x4, offset = 0x4, fixed_abs, tag = 'smem constant byte address 0x4 - core index']
  #allocation1 [shape = 'u32[72,128]{1,0:T(1,128)}', space=vmem, size = 0x9000, scoped, tag = 'internal scratch']
  %s0 = inlined_call_operand.hbm [shape: f32[16,32], index: 0, kind: input, shape index: {}]
  %s1 = inlined_call_operand.hbm [shape: f32[32,32], index: 1, kind: input, shape index: {}]
  %s2 = inlined_call_operand.hbm [shape: f32[2,32], index: 2, kind: input, shape index: {}]
  %s3 = inlined_call_operand.hbm [shape: f32[16,32], index: 3, kind: output, shape index: {}]
  %s4 = sld [smem:[#allocation0]]
  $region34: #{tpu_custom_call.1} parent=0
    _
  %s6 = ssub.s32 1, %s4
  %s7 = scalar_select 0, %s6, %s4
  $region1: #{tpu_custom_call.1} parent=0
    #allocation2 [shape = 'u8[8192]{0}', space=vmem, size = 0x2000, scoped, tag = 'input window, operand 0, single buffered']
    #allocation3 [shape = 's32[1]{0}', space=sflag, size = 0x4, scoped, tag = 'scoped memory for tpu_custom_call.1']
    #allocation4 [shape = 's32[1]{0}', space=sflag, size = 0x4, scoped, tag = 'scoped memory for tpu_custom_call.1']
    #allocation5 [shape = 'u8[16384]{0}', space=vmem, size = 0x4000, scoped, tag = 'input window, operand 1, single buffered']
    #allocation6 [shape = 's32[1]{0}', space=sflag, size = 0x4, scoped, tag = 'scoped memory for tpu_custom_call.1']
    #allocation7 [shape = 'u8[1024]{0}', space=vmem, size = 0x400, scoped, tag = 'input window, operand 2, single buffered']
    #allocation8 [shape = 'u8[8192]{0}', space=vmem, size = 0x2000, scoped, tag = 'output window, operand 0, single buffered']
    %8 = vsyncpa [#allocation3], 0
    %9 = vsyncpa [#allocation6], 0
    %10 = vsyncpa [#allocation4], 0
    // Predicated region
    $region2: #{tpu_custom_call.1} parent=1 // pred_check
      _
    $region3: #{tpu_custom_call.1} parent=1 // pred_check_branch
      %12 = sbr.rel (0) target = $region5
    $region4: #{tpu_custom_call.1} parent=1 // pred_region
      %14 = vsyncadd [#allocation3], 0
      %s15 = sshll.u32 %s0, 4
      %s16 = int_to_ptr.hbm [resolvable:$true] %s15
      %s17 = sshll.u32 [#allocation2], 4
      %s18 = int_to_ptr.vmem [resolvable:$true] %s17
      %23 = dma.hbm_to_vmem [thread:$0]  %s16, 256, %s18, [#allocation3], 128, 128, 8
    $region5: #{tpu_custom_call.1} parent=1 // pred_fallthru
      _
    // Predicated region
    $region6: #{tpu_custom_call.1} parent=1 // pred_check
      _
    $region7: #{tpu_custom_call.1} parent=1 // pred_check_branch
      %25 = sbr.rel (0) target = $region9
    $region8: #{tpu_custom_call.1} parent=1 // pred_region
      %27 = vsyncadd [#allocation6], 0
      %s28 = sshll.u32 %s1, 4
      %s29 = int_to_ptr.hbm [resolvable:$true] %s28
      %s30 = sshll.u32 [#allocation5], 4
      %s31 = int_to_ptr.vmem [resolvable:$true] %s30
      %36 = dma.hbm_to_vmem [thread:$0]  %s29, 512, %s31, [#allocation6], 128, 128, 8
    $region9: #{tpu_custom_call.1} parent=1 // pred_fallthru
      _
    // Predicated region
    $region10: #{tpu_custom_call.1} parent=1 // pred_check
      _
    $region11: #{tpu_custom_call.1} parent=1 // pred_check_branch
      %38 = sbr.rel (0) target = $region13
    $region12: #{tpu_custom_call.1} parent=1 // pred_region
      %40 = vsyncadd [#allocation6], 0
      %s42 = sshll.u32 %s2, 4
      %s43 = int_to_ptr.hbm [resolvable:$true] %s42
      %s44 = sshll.u32 [#allocation7], 4
      %s45 = int_to_ptr.vmem [resolvable:$true] %s44
      %47 = dma.hbm_to_vmem [thread:$0]  %s43, 32, %s45, [#allocation6]
    $region13: #{tpu_custom_call.1} parent=1 // pred_fallthru
      _
    // Predicated region
    $region14: #{tpu_custom_call.1} parent=1 // pred_check
      _
    $region15: #{tpu_custom_call.1} parent=1 // pred_check_branch
      %49 = sbr.rel (0) target = $region17
    $region16: #{tpu_custom_call.1} parent=1 // pred_region
      %51 = dma.done [#allocation3], 256
    $region17: #{tpu_custom_call.1} parent=1 // pred_fallthru
      _
    // Predicated region
    $region18: #{tpu_custom_call.1} parent=1 // pred_check
      _
    $region19: #{tpu_custom_call.1} parent=1 // pred_check_branch
      %53 = sbr.rel (0) target = $region21
    $region20: #{tpu_custom_call.1} parent=1 // pred_region
      %55 = dma.done [#allocation6], 512
    $region21: #{tpu_custom_call.1} parent=1 // pred_fallthru
      _
    // Predicated region
    $region22: #{tpu_custom_call.1} parent=1 // pred_check
      _
    $region23: #{tpu_custom_call.1} parent=1 // pred_check_branch
      %57 = sbr.rel (0) target = $region25
    $region24: #{tpu_custom_call.1} parent=1 // pred_region
      %59 = dma.done [#allocation6], 32
    $region25: #{tpu_custom_call.1} parent=1 // pred_fallthru
      _
    %v60 = vld [vmem:[#allocation2] sm:$0xff]
    %v61 = vld [vmem:[#allocation2 + $0x8] sm:$0xff]
    %v62 = vld [vmem:[#allocation5] sm:$0xff]
    %v63 = vld [vmem:[#allocation5 + $0x8] sm:$0xff]
    %v64 = vld [vmem:[#allocation5 + $0x10] sm:$0xff]
    %v65 = vld [vmem:[#allocation5 + $0x18] sm:$0xff]
    %vm66 = vcmask 261120
    %v68 = vsel %vm66, %v60, 0
    %v71 = vsel %vm66, %v61, 0
    %v74 = vsel %vm66, %v62, 0
    %v77 = vsel %vm66, %v63, 0
    %v80 = vsel %vm66, %v64, 0
    %v83 = vsel %vm66, %v65, 0
    %85 = vmatpush.xpose.msra.mxu0 0.0
    %86 = vmatpush.xpose.msra.mxu0 0.0
    %87 = vmatpush.xpose.msra.mxu0 0.0
    %88 = vmatpush.xpose.msra.mxu0 0.0
    %89 = vmatpush.xpose.msra.mxu0 0.0
    %90 = vmatpush.xpose.msra.mxu0 0.0
    %91 = vmatpush.xpose.msra.mxu0 0.0
    %92 = vmatpush.xpose.msra.mxu0 0.0
    %93 = vmatpush.xpose.msra.mxu0 0.0
    %94 = vmatpush.xpose.msra.mxu0 0.0
    %95 = vmatpush.xpose.msra.mxu0 0.0
    %96 = vmatpush.xpose.msra.mxu0 0.0
    %97 = vmatpush.xpose.msra.mxu0 %v83
    %98 = vmatpush.xpose.msra.mxu0 %v80
    %99 = vmatpush.xpose.msra.mxu0 %v77
    %100 = vmatpush.xpose.msra.mxu0 %v74
    %101 = vmatmul.f32.gmra.mxu0 %v68
    %v102 = vpop.f32.mrf.mxu0
    %v103 = vadd.f32 0.0, %v102
    %104 = vmatmul.f32.gmra.mxu0 %v71
    %v105 = vpop.f32.mrf.mxu0
    %v106 = vadd.f32 0.0, %v105
    %107 = vdwg.mxu0
    %v108 = vld [vmem:[#allocation7] sm:$0x1]
    %v109 = vperm.slane %v108, 0
    %v110 = vmul.f32 %v103, %v109
    %v111 = vmul.f32 %v106, %v109
    %v112 = vsel %vm66, %v110, 0.0
    %113 = vadd.xlane.f32.xlu0 %v112
    %v114 = vpop.xlane.xlu0 %113
    %v115 = vsel %vm66, %v111, 0.0
    %116 = vadd.xlane.f32.xlu0 %v115
    %v117 = vpop.xlane.xlu0 %116
    %v118 = vld [vmem:[#allocation7 + $0x1] sm:$0x1]
    %v120 = vsel %vm66, %v118, 0
    %v123 = vsel %vm66, %v103, 0
    %125 = vmatpush.xpose.msra.mxu0 0.0
    %126 = vmatpush.xpose.msra.mxu0 0.0
    %127 = vmatpush.xpose.msra.mxu0 0.0
    %128 = vmatpush.xpose.msra.mxu0 0.0
    %129 = vmatpush.xpose.msra.mxu0 0.0
    %130 = vmatpush.xpose.msra.mxu0 0.0
    %131 = vmatpush.xpose.msra.mxu0 0.0
    %132 = vmatpush.xpose.msra.mxu0 0.0
    %133 = vmatpush.xpose.msra.mxu0 0.0
    %134 = vmatpush.xpose.msra.mxu0 0.0
    %135 = vmatpush.xpose.msra.mxu0 0.0
    %136 = vmatpush.xpose.msra.mxu0 0.0
    %137 = vmatpush.xpose.msra.mxu0 0.0
    %138 = vmatpush.xpose.msra.mxu0 0.0
    %139 = vmatpush.xpose.msra.mxu0 0.0
    %140 = vmatpush.xpose.msra.mxu0 %v123
    %141 = vmatmul.f32.gmra.mxu0 %v120
    %v142 = vpop.f32.mrf.mxu0
    %v143 = vadd.f32 0.0, %v142
    %144 = vdwg.mxu0
    %v145 = vperm.slane %v143, 0
    %v146 = vadd.f32 %v114, %v145
    %v147 = vmax.f32 %v146, 0.0
    %vm148 = vcmask 57344
    %v149 = vsel %vm148, %v143, -inf
    %150 = vmax.xlane.f32.xlu0 %v149
    %v151 = vpop.xlane.xlu0 %150
    %v152 = vperm.slane %v151, 0
    %v153 = vadd.f32 %v114, %v152
    %v154 = vmax.f32 %v153, 0.0
    %v155 = vsub.f32 %v147, %v154
    %v156 = vmul.f32 %v155, 1.442695
    %v157 = vpow.pop %v156
    %vm158 = vcmask 64512
    %v159 = vsel %vm158, %v157, 0.0
    %160 = vadd.xlane.f32.xlu0 %v159
    %v161 = vpop.xlane.xlu0 %160
    %v163 = vsel %vm158, %v157, 0
    %165 = vmatpush.msra.mxu0 0.0
    %166 = vmatpush.msra.mxu0 0.0
    %167 = vmatpush.msra.mxu0 0.0
    %168 = vmatpush.msra.mxu0 0.0
    %169 = vmatpush.msra.mxu0 0.0
    %170 = vmatpush.msra.mxu0 0.0
    %171 = vmatpush.msra.mxu0 0.0
    %172 = vmatpush.msra.mxu0 0.0
    %173 = vmatpush.msra.mxu0 0.0
    %174 = vmatpush.msra.mxu0 0.0
    %175 = vmatpush.msra.mxu0 0.0
    %176 = vmatpush.msra.mxu0 0.0
    %177 = vmatpush.msra.mxu0 0.0
    %178 = vmatpush.msra.mxu0 0.0
    %179 = vmatpush.msra.mxu0 0.0
    %180 = vmatpush.msra.mxu0 %v103
    %181 = vmatmul.f32.gmra.mxu0 %v163
    %v182 = vpop.f32.mrf.mxu0
    %v183 = vadd.f32 0.0, %v182
    %184 = vdwg.mxu0
    %v185 = vrcp.pop %v161
    %v186 = vmul.f32 %v161, %v185
    %v187 = vsub.f32 2.0, %v186
    %v188 = vmul.f32 %v185, %v187
    %v189 = vmul.f32 %v183, %v188
    %v190 = vmax.f32 %v189, 0.0
    %191 = vst.msk [vmem:[#allocation8] sm:$0xff] %vm66, %v190
    %v192 = vld [vmem:[#allocation7 + $0x1] sm:$0x1]
    %v194 = vsel %vm66, %v192, 0
    %v197 = vsel %vm66, %v106, 0
    %199 = vmatpush.xpose.msra.mxu0 0.0
    %200 = vmatpush.xpose.msra.mxu0 0.0
    %201 = vmatpush.xpose.msra.mxu0 0.0
    %202 = vmatpush.xpose.msra.mxu0 0.0
    %203 = vmatpush.xpose.msra.mxu0 0.0
    %204 = vmatpush.xpose.msra.mxu0 0.0
    %205 = vmatpush.xpose.msra.mxu0 0.0
    %206 = vmatpush.xpose.msra.mxu0 0.0
    %207 = vmatpush.xpose.msra.mxu0 0.0
    %208 = vmatpush.xpose.msra.mxu0 0.0
    %209 = vmatpush.xpose.msra.mxu0 0.0
    %210 = vmatpush.xpose.msra.mxu0 0.0
    %211 = vmatpush.xpose.msra.mxu0 0.0
    %212 = vmatpush.xpose.msra.mxu0 0.0
    %213 = vmatpush.xpose.msra.mxu0 0.0
    %214 = vmatpush.xpose.msra.mxu0 %v197
    %215 = vmatmul.f32.gmra.mxu0 %v194
    %v216 = vpop.f32.mrf.mxu0
    %v217 = vadd.f32 0.0, %v216
    %218 = vdwg.mxu0
    %v219 = vperm.slane %v217, 0
    %v220 = vadd.f32 %v117, %v219
    %v221 = vmax.f32 %v220, 0.0
    %v222 = vsel %vm148, %v217, -inf
    %223 = vmax.xlane.f32.xlu0 %v222
    %v224 = vpop.xlane.xlu0 %223
    %v225 = vperm.slane %v224, 0
    %v226 = vadd.f32 %v117, %v225
    %v227 = vmax.f32 %v226, 0.0
    %v228 = vsub.f32 %v221, %v227
    %v229 = vmul.f32 %v228, 1.442695
    %v230 = vpow.pop %v229
    %v231 = vsel %vm158, %v230, 0.0
    %232 = vadd.xlane.f32.xlu0 %v231
    %v233 = vpop.xlane.xlu0 %232
    %v235 = vsel %vm158, %v230, 0
    %237 = vmatpush.msra.mxu0 0.0
    %238 = vmatpush.msra.mxu0 0.0
    %239 = vmatpush.msra.mxu0 0.0
    %240 = vmatpush.msra.mxu0 0.0
    %241 = vmatpush.msra.mxu0 0.0
    %242 = vmatpush.msra.mxu0 0.0
    %243 = vmatpush.msra.mxu0 0.0
    %244 = vmatpush.msra.mxu0 0.0
    %245 = vmatpush.msra.mxu0 0.0
    %246 = vmatpush.msra.mxu0 0.0
    %247 = vmatpush.msra.mxu0 0.0
    %248 = vmatpush.msra.mxu0 0.0
    %249 = vmatpush.msra.mxu0 0.0
    %250 = vmatpush.msra.mxu0 0.0
    %251 = vmatpush.msra.mxu0 0.0
    %252 = vmatpush.msra.mxu0 %v106
    %253 = vmatmul.f32.gmra.mxu0 %v235
    %v254 = vpop.f32.mrf.mxu0
    %v255 = vadd.f32 0.0, %v254
    %256 = vdwg.mxu0
    %v257 = vrcp.pop %v233
    %v258 = vmul.f32 %v233, %v257
    %v259 = vsub.f32 2.0, %v258
    %v260 = vmul.f32 %v257, %v259
    %v261 = vmul.f32 %v255, %v260
    %v262 = vmax.f32 %v261, 0.0
    %263 = vst.msk [vmem:[#allocation8 + $0x8] sm:$0xff] %vm66, %v262
    // Predicated region
    $region26: #{tpu_custom_call.1} parent=1 // pred_check
      _
    $region27: #{tpu_custom_call.1} parent=1 // pred_check_branch
      %265 = sbr.rel (0) target = $region29
    $region28: #{tpu_custom_call.1} parent=1 // pred_region
      %267 = vsyncadd [#allocation4], 0
      %s268 = sshll.u32 [#allocation8], 4
      %s269 = int_to_ptr.vmem [resolvable:$true] %s268
      %s270 = sshll.u32 %s3, 4
      %s271 = int_to_ptr.hbm [resolvable:$true] %s270
      %276 = dma.vmem_to_hbm [thread:$0]  %s269, 256, %s271, [#allocation4], 128, 128, 8
    $region29: #{tpu_custom_call.1} parent=1 // pred_fallthru
      _
    // Predicated region
    $region30: #{tpu_custom_call.1} parent=1 // pred_check
      _
    $region31: #{tpu_custom_call.1} parent=1 // pred_check_branch
      %278 = sbr.rel (0) target = $region33
    $region32: #{tpu_custom_call.1} parent=1 // pred_region
      %280 = dma.done [#allocation4], 256
    $region33: #{tpu_custom_call.1} parent=1 // pred_fallthru
      _
    %281 = vsyncpa [#allocation3], 1
    %282 = vsyncpa [#allocation6], 1
    %283 = vsyncpa [#allocation4], 1

</llo_original>
